<compile_context>
chip_gen: v7x
topology: tpu7x:2x2x1
jax: 0.10.0
libtpu: 0.0.40
codegen_flags: <defaults>
</compile_context>

<pallas_src>
import functools

import jax
import jax.numpy as jnp
from jax.experimental import pallas as pl
from jax.experimental.pallas import tpu as pltpu


# ----------------------------------------------------------------------------
# Helpers
# ----------------------------------------------------------------------------
def _round_up(x, m):
    return (x + m - 1) // m * m


# ----------------------------------------------------------------------------
# Parameter packing: one lane-dense f32 slab, 8-sublane-aligned sections.
# ----------------------------------------------------------------------------
def pack_actor_params(params):
    """Pack (emb, w1, b1, w2, b2, w3, b3) into a single [R, 128] f32 slab.

    Layout (all row offsets are multiples of 8; w2 / w3 are zero-padded to
    full 128x128 so the in-kernel matmuls never slice the lane dimension):
      row  r_emb          : embedding table transposed, [1, S]   (E must be 1)
      row  r_w1           : w1 row,                     [1, H]
      row  r_b1           : b1,                         [1, H]
      row  r_b2           : b2,                         [1, H]
      row  r_b3           : b3,                         [1, A]
      rows r_w2..r_w2+127 : w2 zero-padded,             [128, 128]
      rows r_w3..r_w3+127 : w3 zero-padded,             [128, 128]
    """
    emb, w1, b1, w2, b2, w3, b3 = params
    S, E = emb.shape
    H = w1.shape[1]
    A = w3.shape[1]
    assert E == 1, "kernel assumes embed_dim == 1 (module default)"
    assert S <= 128 and H <= 128 and A <= 128

    L = 128
    r_emb = 0
    r_w1 = 8
    r_b1 = 16
    r_b2 = 24
    r_b3 = 32
    r_w2 = 40
    r_w3 = r_w2 + L
    R = r_w3 + L

    slab = jnp.zeros((R, L), jnp.float32)
    slab = slab.at[r_emb, :S].set(emb[:, 0].astype(jnp.float32))
    slab = slab.at[r_w1, :H].set(w1[0].astype(jnp.float32))
    slab = slab.at[r_b1, :H].set(b1.reshape(-1).astype(jnp.float32))
    slab = slab.at[r_b2, :H].set(b2.reshape(-1).astype(jnp.float32))
    slab = slab.at[r_b3, :A].set(b3.reshape(-1).astype(jnp.float32))
    slab = slab.at[r_w2:r_w2 + H, :H].set(w2.astype(jnp.float32))
    slab = slab.at[r_w3:r_w3 + H, :A].set(w3.astype(jnp.float32))

    rows = (r_emb, r_w1, r_b1, r_b2, r_b3, r_w2, r_w3)
    dims = (S, H, A)
    return slab, rows, dims


# ----------------------------------------------------------------------------
# Kernel
# ----------------------------------------------------------------------------
def actor_kernel(noise_ref, slab_ref, out_ref, *,
                 A, rows, temperature, deterministic):
    BM, L = out_ref.shape                       # lane-dense block, L == 128
    r_emb, r_w1, r_b1, r_b2, r_b3, r_w2, r_w3 = rows
    NEG = jnp.float32(-1e30)

    # Single lane-iota, reused everywhere (obs extract, gather, mask, argmax,
    # fused output write).
    lane = jax.lax.broadcasted_iota(jnp.int32, (BM, L), 1)
    valid = lane < A

    # ---- Per-row fused input: gumbel in lanes [0, A), float(obs) in lane L-1
    row_in = noise_ref[...]                                   # [BM, L] f32
    ids = jnp.sum(jnp.where(lane == L - 1, row_in, 0.0),
                  axis=1, keepdims=True).astype(jnp.int32)    # [BM, 1]

    # ---- Embedding lookup (E == 1): VPU compare + XLU lane-reduce, no MXU ----
    emb_row = slab_ref[r_emb:r_emb + 1, :]                    # [1, L]
    x = jnp.sum(jnp.where(lane == ids, emb_row, 0.0),
                axis=1, keepdims=True)                        # [BM, 1]

    # ---- Linear(E=1 -> H) as a broadcast multiply (VPU); padded lanes -> 0 ----
    w1 = slab_ref[r_w1:r_w1 + 1, :]                           # [1, L]
    b1 = slab_ref[r_b1:r_b1 + 1, :]                           # [1, L]
    h1 = jnp.tanh(x * w1 + b1)                                # [BM, L]

    # ---- Linear(H,H) -> tanh -> Linear(H,A): full 128-lane MXU matmuls ----
    w2 = slab_ref[r_w2:r_w2 + L, :]                           # [L, L] zero-padded
    b2 = slab_ref[r_b2:r_b2 + 1, :]
    h2 = jnp.tanh(jnp.dot(h1, w2, preferred_element_type=jnp.float32) + b2)

    w3 = slab_ref[r_w3:r_w3 + L, :]                           # [L, L] zero-padded
    b3 = slab_ref[r_b3:r_b3 + 1, :]
    logits = jnp.dot(h2, w3, preferred_element_type=jnp.float32) + b3
    logits = jnp.where(valid, logits, NEG)                    # mask lanes >= A

    # ---- Categorical(logits): stable log-softmax & entropy (padded p == 0) ----
    m = jnp.max(logits, axis=-1, keepdims=True)
    z = logits - m
    e = jnp.exp(z)
    s = jnp.sum(e, axis=-1, keepdims=True)
    logp = z - jnp.log(s)                                     # [BM, L]
    p = e / s
    entropy = -jnp.sum(p * logp, axis=-1, keepdims=True)      # [BM, 1]

    # ---- Action: Gumbel-max sample of Categorical(logits / temperature) ----
    if deterministic:
        scores = logits
    else:
        scaled = logits if temperature == 1.0 else logits * (1.0 / temperature)
        scores = jnp.where(valid, scaled + row_in, NEG)       # full-width add

    smax = jnp.max(scores, axis=-1, keepdims=True)
    # first-index argmax (ties -> lowest index, matching torch.argmax)
    action = jnp.min(jnp.where(scores == smax, lane, L),
                     axis=-1, keepdims=True)                  # [BM, 1] int32

    # log_prob of chosen action under the (unscaled) action distribution
    logprob = jnp.sum(jnp.where(lane == action, logp, 0.0),
                      axis=-1, keepdims=True)                 # [BM, 1]

    # ---- Single fused lane-dense output: col0=action, col1=logp, col2=entropy
    out_ref[...] = jnp.where(lane == 0, action.astype(jnp.float32),
                   jnp.where(lane == 1, logprob,
                   jnp.where(lane == 2, entropy, 0.0)))


# ----------------------------------------------------------------------------
# Wrapper
# ----------------------------------------------------------------------------
def actor_forward(obs, slab, rows, dims, *, key=None, temperature=1.0,
                  deterministic=False, block_rows=256):
    """obs: [B] int32 state indices.  Returns (action[B], log_prob[B], entropy[B])."""
    _, H, A = dims
    B = obs.shape[0]
    R, L = slab.shape

    if temperature is None:                  # torch: temperature None -> argmax
        deterministic = True
        temperature = 1.0

    # Batch chunking: one grid step per BM rows; the parameter slab stays
    # resident across all grid steps (constant block index).
    BM = _round_up(min(block_rows, max(B, 8)), 8)
    n_chunks = pl.cdiv(B, BM)
    Bp = n_chunks * BM

    # Per-row lane-dense fused input: gumbel noise in lanes [0, A), obs index
    # (exactly representable as f32) in the last lane.  One DMA for both.
    noise = jnp.zeros((Bp, L), jnp.float32)
    if not deterministic:
        if key is None:
            raise ValueError("key is required for stochastic sampling")
        # NOTE: Gumbel noise is generated host-side (pltpu.prng_* does not
        # lower on the CPU/interpret path).
        g = jax.random.gumbel(key, (Bp, A), jnp.float32)
        noise = noise.at[:, :A].set(g)
    noise = noise.at[:B, L - 1].set(obs.astype(jnp.float32))

    kernel = functools.partial(
        actor_kernel, A=A, rows=rows,
        temperature=float(temperature), deterministic=bool(deterministic))

    grid_spec = pltpu.PrefetchScalarGridSpec(
        num_scalar_prefetch=0,
        grid=(n_chunks,),
        in_specs=[pl.BlockSpec((BM, L), lambda i: (i, 0)),   # per-row input
                  pl.BlockSpec((R, L), lambda i: (0, 0))],   # resident params
        out_specs=pl.BlockSpec((BM, L), lambda i: (i, 0)),
    )

    out = pl.pallas_call(
        kernel,
        grid_spec=grid_spec,
        out_shape=jax.ShapeDtypeStruct((Bp, L), jnp.float32),
        compiler_params=pltpu.CompilerParams(
            dimension_semantics=("parallel",)),
    )(noise, slab)

    action = out[:B, 0].astype(jnp.int32)
    log_prob = out[:B, 1]
    entropy = out[:B, 2]
    return action, log_prob, entropy


# ----------------------------------------------------------------------------
# Reference init & pure-JAX reference forward (for correctness checks)
# ----------------------------------------------------------------------------
def init_actor_params(key, action_dim, hidden_dim, max_states=100, embed_dim=1):
    """Init mimicking PyTorch defaults (Embedding ~ N(0,1),
    Linear ~ U(-1/sqrt(fan_in), 1/sqrt(fan_in))).  Linear weights stored
    [in_dim, out_dim]; biases [1, out_dim]."""
    ks = jax.random.split(key, 7)

    def lin(kw, kb, fan_in, fan_out):
        bound = 1.0 / jnp.sqrt(fan_in)
        w = jax.random.uniform(kw, (fan_in, fan_out), jnp.float32, -bound, bound)
        b = jax.random.uniform(kb, (1, fan_out), jnp.float32, -bound, bound)
        return w, b

    emb = jax.random.normal(ks[0], (max_states, embed_dim), jnp.float32)
    w1, b1 = lin(ks[1], ks[2], embed_dim, hidden_dim)
    w2, b2 = lin(ks[3], ks[4], hidden_dim, hidden_dim)
    w3, b3 = lin(ks[5], ks[6], hidden_dim, action_dim)
    return (emb, w1, b1, w2, b2, w3, b3)


def actor_logits_ref(obs, params):
    emb, w1, b1, w2, b2, w3, b3 = params
    x = emb[obs]                                    # [B, E]
    h1 = jnp.tanh(x @ w1 + b1)
    h2 = jnp.tanh(h1 @ w2 + b2)
    return h2 @ w3 + b3                             # [B, A]


# ----------------------------------------------------------------------------
if __name__ == "__main__":
    # Small, FrozenLake-like shapes.
    B = 8            # batch of observations
    ACTION_DIM = 4   # left/down/right/up
    HIDDEN_DIM = 32
    MAX_STATES = 100
    EMBED_DIM = 1

    key = jax.random.PRNGKey(0)
    k_param, k_obs, k_gumbel = jax.random.split(key, 3)

    params = init_actor_params(k_param, ACTION_DIM, HIDDEN_DIM,
                               max_states=MAX_STATES, embed_dim=EMBED_DIM)
    obs = jax.random.randint(k_obs, (B,), 0, 16, dtype=jnp.int32)

    # Pack weights once per parameter update (reused across rollout steps).
    slab, rows, dims = pack_actor_params(params)

    # Pure-JAX reference distribution quantities.
    logits_ref = actor_logits_ref(obs, params)
    logp_ref = jax.nn.log_softmax(logits_ref, axis=-1)
    p_ref = jnp.exp(logp_ref)
    ent_ref = -jnp.sum(p_ref * logp_ref, axis=-1)

    # --- stochastic call (Gumbel-max sampling) ---
    action, log_prob, entropy = actor_forward(
        obs, slab, rows, dims, key=k_gumbel, temperature=1.0,
        deterministic=False)
    jax.block_until_ready((action, log_prob, entropy))

    assert jnp.all((action >= 0) & (action < ACTION_DIM)), "action out of range"
    lp_at_action = jnp.take_along_axis(logp_ref, action[:, None], axis=-1)[:, 0]
    assert jnp.allclose(log_prob, lp_at_action, atol=1e-3), "log_prob mismatch"
    assert jnp.allclose(entropy, ent_ref, atol=1e-3), "entropy mismatch"

    # Kernel's Gumbel-max sample must match the same-noise pure-JAX sample.
    g_ref = jax.random.gumbel(k_gumbel, (B, ACTION_DIM), jnp.float32)
    a_sample_ref = jnp.argmax(logits_ref + g_ref, axis=-1).astype(jnp.int32)
    assert jnp.all(action == a_sample_ref), "sampled action mismatch"

    # --- deterministic call must reproduce argmax(logits) exactly ---
    a_det, lp_det, ent_det = actor_forward(
        obs, slab, rows, dims, temperature=1.0, deterministic=True)
    jax.block_until_ready((a_det, lp_det, ent_det))
    a_ref = jnp.argmax(logits_ref, axis=-1).astype(jnp.int32)
    lp_det_ref = jnp.take_along_axis(logp_ref, a_ref[:, None], axis=-1)[:, 0]
    assert jnp.all(a_det == a_ref), "deterministic action mismatch"
    assert jnp.allclose(lp_det, lp_det_ref, atol=1e-3), "det log_prob mismatch"
    assert jnp.allclose(ent_det, ent_ref, atol=1e-3), "det entropy mismatch"

    print("KERNEL_OK")
</pallas_src>

<mosaic_0001>
module attributes {stable_mosaic.version = 11 : i64} {
  func.func @actor_kernel(%arg0: i32, %arg1: memref<8x128xf32, #tpu.memory_space<vmem>>, %arg2: memref<296x128xf32, #tpu.memory_space<vmem>>, %arg3: memref<8x128xf32, #tpu.memory_space<vmem>>) attributes {dimension_semantics = [#tpu.dimension_semantics<parallel>], iteration_bounds = array<i64: 1>, scalar_prefetch = 0 : i64, scratch_operands = 0 : i64, tpu.core_type = #tpu.core_type<tc>, window_params = [{transform_indices = @transform_0, window_bounds = array<i64: 8, 128>}, {pipeline_mode = #tpu.pipeline_mode<synchronous>, transform_indices = @transform_1, window_bounds = array<i64: 296, 128>}, {transform_indices = @transform_2, window_bounds = array<i64: 8, 128>}]} {
    %0 = tpu.iota {dimensions = array<i32: 1>} : vector<8x128xi32>
    %c4_i32 = arith.constant 4 : i32
    %1 = vector.broadcast %c4_i32 : i32 to vector<8x128xi32>
    %2 = arith.cmpi slt, %0, %1 : vector<8x128xi32>
    %c0 = arith.constant 0 : index
    %c0_0 = arith.constant 0 : index
    %3 = vector.load %arg1[%c0, %c0_0] : memref<8x128xf32, #tpu.memory_space<vmem>>, vector<8x128xf32>
    %c127_i32 = arith.constant 127 : i32
    %4 = vector.broadcast %c127_i32 : i32 to vector<8x128xi32>
    %5 = arith.cmpi eq, %0, %4 : vector<8x128xi32>
    %cst = arith.constant 0.000000e+00 : f32
    %6 = vector.broadcast %cst : f32 to vector<8x128xf32>
    %7 = arith.select %5, %3, %6 : vector<8x128xi1>, vector<8x128xf32>
    %cst_1 = arith.constant dense<0.000000e+00> : vector<8xf32>
    %8 = vector.multi_reduction <add>, %7, %cst_1 [1] : vector<8x128xf32> to vector<8xf32>
    %9 = vector.shape_cast %8 : vector<8xf32> to vector<8x1xf32>
    %10 = arith.fptosi %9 : vector<8x1xf32> to vector<8x1xi32>
    %c0_2 = arith.constant 0 : index
    %c0_3 = arith.constant 0 : index
    %11 = vector.load %arg2[%c0_2, %c0_3] : memref<296x128xf32, #tpu.memory_space<vmem>>, vector<1x128xf32>
    %12 = vector.broadcast %10 : vector<8x1xi32> to vector<8x128xi32>
    %13 = arith.cmpi eq, %0, %12 : vector<8x128xi32>
    %cst_4 = arith.constant 0.000000e+00 : f32
    %14 = vector.shape_cast %11 : vector<1x128xf32> to vector<1x128xf32>
    %15 = vector.broadcast %14 : vector<1x128xf32> to vector<8x128xf32>
    %16 = vector.broadcast %cst_4 : f32 to vector<8x128xf32>
    %17 = arith.select %13, %15, %16 : vector<8x128xi1>, vector<8x128xf32>
    %cst_5 = arith.constant dense<0.000000e+00> : vector<8xf32>
    %18 = vector.multi_reduction <add>, %17, %cst_5 [1] : vector<8x128xf32> to vector<8xf32>
    %19 = vector.shape_cast %18 : vector<8xf32> to vector<8x1xf32>
    %c8 = arith.constant 8 : index
    %c0_6 = arith.constant 0 : index
    %20 = vector.load %arg2[%c8, %c0_6] : memref<296x128xf32, #tpu.memory_space<vmem>>, vector<1x128xf32>
    %c16 = arith.constant 16 : index
    %c0_7 = arith.constant 0 : index
    %21 = vector.load %arg2[%c16, %c0_7] : memref<296x128xf32, #tpu.memory_space<vmem>>, vector<1x128xf32>
    %22 = vector.broadcast %19 : vector<8x1xf32> to vector<8x128xf32>
    %23 = vector.broadcast %20 : vector<1x128xf32> to vector<8x128xf32>
    %24 = arith.mulf %22, %23 : vector<8x128xf32>
    %25 = vector.broadcast %21 : vector<1x128xf32> to vector<8x128xf32>
    %26 = arith.addf %24, %25 : vector<8x128xf32>
    %27 = math.tanh %26 : vector<8x128xf32>
    %c40 = arith.constant 40 : index
    %c0_8 = arith.constant 0 : index
    %28 = vector.load %arg2[%c40, %c0_8] : memref<296x128xf32, #tpu.memory_space<vmem>>, vector<128x128xf32>
    %c24 = arith.constant 24 : index
    %c0_9 = arith.constant 0 : index
    %29 = vector.load %arg2[%c24, %c0_9] : memref<296x128xf32, #tpu.memory_space<vmem>>, vector<1x128xf32>
    %cst_10 = arith.constant dense<0.000000e+00> : vector<8x128xf32>
    %30 = tpu.matmul %27, %28, %cst_10 {dimension_numbers = #tpu.dot_dimension_numbers<[1], [0], [0], [1], [0, 0, 1, 1], [], []>} : vector<8x128xf32>, vector<128x128xf32>, vector<8x128xf32> -> vector<8x128xf32>
    %31 = vector.broadcast %29 : vector<1x128xf32> to vector<8x128xf32>
    %32 = arith.addf %30, %31 : vector<8x128xf32>
    %33 = math.tanh %32 : vector<8x128xf32>
    %c168 = arith.constant 168 : index
    %c0_11 = arith.constant 0 : index
    %34 = vector.load %arg2[%c168, %c0_11] : memref<296x128xf32, #tpu.memory_space<vmem>>, vector<128x128xf32>
    %c32 = arith.constant 32 : index
    %c0_12 = arith.constant 0 : index
    %35 = vector.load %arg2[%c32, %c0_12] : memref<296x128xf32, #tpu.memory_space<vmem>>, vector<1x128xf32>
    %cst_13 = arith.constant dense<0.000000e+00> : vector<8x128xf32>
    %36 = tpu.matmul %33, %34, %cst_13 {dimension_numbers = #tpu.dot_dimension_numbers<[1], [0], [0], [1], [0, 0, 1, 1], [], []>} : vector<8x128xf32>, vector<128x128xf32>, vector<8x128xf32> -> vector<8x128xf32>
    %37 = vector.broadcast %35 : vector<1x128xf32> to vector<8x128xf32>
    %38 = arith.addf %36, %37 : vector<8x128xf32>
    %cst_14 = arith.constant -1.000000e+30 : f32
    %39 = vector.broadcast %cst_14 : f32 to vector<8x128xf32>
    %40 = arith.select %2, %38, %39 : vector<8x128xi1>, vector<8x128xf32>
    %cst_15 = arith.constant dense<0xFF800000> : vector<8xf32>
    %41 = vector.multi_reduction <maximumf>, %40, %cst_15 [1] : vector<8x128xf32> to vector<8xf32>
    %42 = vector.shape_cast %41 : vector<8xf32> to vector<8x1xf32>
    %43 = vector.broadcast %42 : vector<8x1xf32> to vector<8x128xf32>
    %44 = arith.subf %40, %43 : vector<8x128xf32>
    %45 = math.exp %44 : vector<8x128xf32>
    %cst_16 = arith.constant dense<0.000000e+00> : vector<8xf32>
    %46 = vector.multi_reduction <add>, %45, %cst_16 [1] : vector<8x128xf32> to vector<8xf32>
    %47 = vector.shape_cast %46 : vector<8xf32> to vector<8x1xf32>
    %48 = math.log %47 : vector<8x1xf32>
    %49 = vector.broadcast %48 : vector<8x1xf32> to vector<8x128xf32>
    %50 = arith.subf %44, %49 : vector<8x128xf32>
    %51 = vector.broadcast %47 : vector<8x1xf32> to vector<8x128xf32>
    %52 = arith.divf %45, %51 : vector<8x128xf32>
    %53 = arith.mulf %52, %50 : vector<8x128xf32>
    %cst_17 = arith.constant dense<0.000000e+00> : vector<8xf32>
    %54 = vector.multi_reduction <add>, %53, %cst_17 [1] : vector<8x128xf32> to vector<8xf32>
    %55 = vector.shape_cast %54 : vector<8xf32> to vector<8x1xf32>
    %cst_18 = arith.constant 0.000000e+00 : f32
    %56 = vector.broadcast %cst_18 : f32 to vector<8x1xf32>
    %57 = arith.subf %56, %55 : vector<8x1xf32>
    %58 = arith.addf %40, %3 : vector<8x128xf32>
    %cst_19 = arith.constant -1.000000e+30 : f32
    %59 = vector.broadcast %cst_19 : f32 to vector<8x128xf32>
    %60 = arith.select %2, %58, %59 : vector<8x128xi1>, vector<8x128xf32>
    %cst_20 = arith.constant dense<0xFF800000> : vector<8xf32>
    %61 = vector.multi_reduction <maximumf>, %60, %cst_20 [1] : vector<8x128xf32> to vector<8xf32>
    %62 = vector.shape_cast %61 : vector<8xf32> to vector<8x1xf32>
    %63 = vector.broadcast %62 : vector<8x1xf32> to vector<8x128xf32>
    %64 = arith.cmpf oeq, %60, %63 : vector<8x128xf32>
    %c128_i32 = arith.constant 128 : i32
    %65 = vector.broadcast %c128_i32 : i32 to vector<8x128xi32>
    %66 = arith.select %64, %0, %65 : vector<8x128xi1>, vector<8x128xi32>
    %cst_21 = arith.constant dense<2147483647> : vector<8xi32>
    %67 = vector.multi_reduction <minsi>, %66, %cst_21 [1] : vector<8x128xi32> to vector<8xi32>
    %68 = vector.shape_cast %67 : vector<8xi32> to vector<8x1xi32>
    %69 = vector.broadcast %68 : vector<8x1xi32> to vector<8x128xi32>
    %70 = arith.cmpi eq, %0, %69 : vector<8x128xi32>
    %cst_22 = arith.constant 0.000000e+00 : f32
    %71 = vector.broadcast %cst_22 : f32 to vector<8x128xf32>
    %72 = arith.select %70, %50, %71 : vector<8x128xi1>, vector<8x128xf32>
    %cst_23 = arith.constant dense<0.000000e+00> : vector<8xf32>
    %73 = vector.multi_reduction <add>, %72, %cst_23 [1] : vector<8x128xf32> to vector<8xf32>
    %74 = vector.shape_cast %73 : vector<8xf32> to vector<8x1xf32>
    %c0_i32 = arith.constant 0 : i32
    %75 = vector.broadcast %c0_i32 : i32 to vector<8x128xi32>
    %76 = arith.cmpi eq, %0, %75 : vector<8x128xi32>
    %77 = arith.sitofp %68 : vector<8x1xi32> to vector<8x1xf32>
    %c1_i32 = arith.constant 1 : i32
    %78 = vector.broadcast %c1_i32 : i32 to vector<8x128xi32>
    %79 = arith.cmpi eq, %0, %78 : vector<8x128xi32>
    %c2_i32 = arith.constant 2 : i32
    %80 = vector.broadcast %c2_i32 : i32 to vector<8x128xi32>
    %81 = arith.cmpi eq, %0, %80 : vector<8x128xi32>
    %cst_24 = arith.constant 0.000000e+00 : f32
    %82 = vector.shape_cast %57 : vector<8x1xf32> to vector<8x1xf32>
    %83 = vector.broadcast %82 : vector<8x1xf32> to vector<8x128xf32>
    %84 = vector.broadcast %cst_24 : f32 to vector<8x128xf32>
    %85 = arith.select %81, %83, %84 : vector<8x128xi1>, vector<8x128xf32>
    %86 = vector.shape_cast %74 : vector<8x1xf32> to vector<8x1xf32>
    %87 = vector.broadcast %86 : vector<8x1xf32> to vector<8x128xf32>
    %88 = arith.select %79, %87, %85 : vector<8x128xi1>, vector<8x128xf32>
    %89 = vector.shape_cast %77 : vector<8x1xf32> to vector<8x1xf32>
    %90 = vector.broadcast %89 : vector<8x1xf32> to vector<8x128xf32>
    %91 = arith.select %76, %90, %88 : vector<8x128xi1>, vector<8x128xf32>
    %c0_25 = arith.constant 0 : index
    %c0_26 = arith.constant 0 : index
    %92 = vector.load %arg3[%c0_25, %c0_26] : memref<8x128xf32, #tpu.memory_space<vmem>>, vector<8x128xf32>
    tpu.vector_store %arg3[%c0_25, %c0_26], %91 {strides = array<i32>} : memref<8x128xf32, #tpu.memory_space<vmem>>, vector<8x128xf32>,
    return
  }
  func.func @transform_0(%arg0: i32) -> (i32, i32) {
    %c0_i32 = arith.constant 0 : i32
    %c0_i32_0 = arith.constant 0 : i32
    return %arg0, %c0_i32 : i32, i32
  }
  func.func @transform_1(%arg0: i32) -> (i32, i32) {
    %c0_i32 = arith.constant 0 : i32
    %c0_i32_0 = arith.constant 0 : i32
    %c0_i32_1 = arith.constant 0 : i32
    return %c0_i32, %c0_i32_0 : i32, i32
  }
  func.func @transform_2(%arg0: i32) -> (i32, i32) {
    %c0_i32 = arith.constant 0 : i32
    %c0_i32_0 = arith.constant 0 : i32
    return %arg0, %c0_i32 : i32, i32
  }
}

</mosaic_0001>

<llo_original>
// kernel: tpu_custom_call.1
$region0: #{tpu_custom_call.1}
  #allocation0 [shape = 'u32[]', space=smem, size = 0x4, offset = 0x4, fixed_abs, tag = 'smem constant byte address 0x4 - core index']
  #allocation1 [shape = 'u32[144,128]{1,0:T(1,128)}', space=vmem, size = 0x12000, scoped, tag = 'internal scratch']
  %s0 = inlined_call_operand.hbm [shape: f32[8,128], index: 0, kind: input, shape index: {}]
  %s1 = inlined_call_operand.hbm [shape: f32[296,128], index: 1, kind: input, shape index: {}]
  %s2 = inlined_call_operand.hbm [shape: f32[8,128], index: 2, kind: output, shape index: {}]
  %s3 = sld [smem:[#allocation0]]
  $region26: #{tpu_custom_call.1} parent=0
    _
  %s5 = ssub.s32 1, %s3
  %s6 = scalar_select 0, %s5, %s3
  $region1: #{tpu_custom_call.1} parent=0
    #allocation2 [shape = 'u8[4096]{0}', space=vmem, size = 0x1000, scoped, tag = 'input window, operand 0, single buffered']
    #allocation3 [shape = 's32[1]{0}', space=sflag, size = 0x4, scoped, tag = 'scoped memory for tpu_custom_call.1']
    #allocation4 [shape = 's32[1]{0}', space=sflag, size = 0x4, scoped, tag = 'scoped memory for tpu_custom_call.1']
    #allocation5 [shape = 'u8[151552]{0}', space=vmem, size = 0x25000, scoped, tag = 'input window, operand 1, single buffered']
    #allocation6 [shape = 's32[1]{0}', space=sflag, size = 0x4, scoped, tag = 'scoped memory for tpu_custom_call.1']
    #allocation7 [shape = 'u8[4096]{0}', space=vmem, size = 0x1000, scoped, tag = 'output window, operand 0, single buffered']
    %7 = vsyncpa [#allocation3], 0
    %8 = vsyncpa [#allocation6], 0
    %9 = vsyncpa [#allocation4], 0
    // Predicated region
    $region2: #{tpu_custom_call.1} parent=1 // pred_check
      _
    $region3: #{tpu_custom_call.1} parent=1 // pred_check_branch
      %11 = sbr.rel (0) target = $region5
    $region4: #{tpu_custom_call.1} parent=1 // pred_region
      %s13 = ssub.s32 128, 128
      %14 = vsyncadd [#allocation3], %s13
      %s16 = sshll.u32 [#allocation2], 4
      %s17 = int_to_ptr.vmem [resolvable:$true] %s16
      %19 = dma.hbm_to_vmem [thread:$0]  %s0, 128, %s17, [#allocation3]
    $region5: #{tpu_custom_call.1} parent=1 // pred_fallthru
      _
    // Predicated region
    $region6: #{tpu_custom_call.1} parent=1 // pred_check
      _
    $region7: #{tpu_custom_call.1} parent=1 // pred_check_branch
      %21 = sbr.rel (0) target = $region9
    $region8: #{tpu_custom_call.1} parent=1 // pred_region
      %s23 = ssub.s32 4736, 4736
      %24 = vsyncadd [#allocation6], %s23
      %s25 = sshll.u32 [#allocation5], 4
      %s26 = int_to_ptr.vmem [resolvable:$true] %s25
      %31 = dma.hbm_to_vmem [thread:$0]  %s1, 4736, %s26, [#allocation6], 128, 128, 8
    $region9: #{tpu_custom_call.1} parent=1 // pred_fallthru
      _
    // Predicated region
    $region10: #{tpu_custom_call.1} parent=1 // pred_check
      _
    $region11: #{tpu_custom_call.1} parent=1 // pred_check_branch
      %33 = sbr.rel (0) target = $region13
    $region12: #{tpu_custom_call.1} parent=1 // pred_region
      %34 = dma.done [#allocation3], 128
    $region13: #{tpu_custom_call.1} parent=1 // pred_fallthru
      _
    // Predicated region
    $region14: #{tpu_custom_call.1} parent=1 // pred_check
      _
    $region15: #{tpu_custom_call.1} parent=1 // pred_check_branch
      %36 = sbr.rel (0) target = $region17
    $region16: #{tpu_custom_call.1} parent=1 // pred_region
      %37 = dma.done [#allocation6], 4736
    $region17: #{tpu_custom_call.1} parent=1 // pred_fallthru
      _
    %v38 = vlaneseq
    %v39 = vand.u32 %v38, 127
    %vm40 = vcmp.lt.s32.totalorder %v39, 4
    %v41 = vld [vmem:[#allocation2] sm:$0xff]
    %vm42 = vcmp.eq.s32.totalorder %v39, 127
    %v43 = vsel %vm42, %v41, 0.0
    %44 = vadd.xlane.f32.xlu0 %v43
    %v45 = vpop.xlane.xlu0 %44
    %v46 = vcvt.f32.s32.to.zero.pseudo %v45
    %v47 = vld [vmem:[#allocation5] sm:$0x1]
    %vm48 = vcmp.eq.s32.totalorder %v39, %v46
    %v49 = vlaneseq
    %v50 = vshrl.u32 %v49, 7
    %v51 = vsub.s32 0, %v50
    %v52 = vrot.slane %v47, %v51
    %v53 = vsel %vm48, %v52, 0.0
    %54 = vadd.xlane.f32.xlu0 %v53
    %v55 = vpop.xlane.xlu0 %54
    %v56 = vld [vmem:[#allocation5 + $0x8] sm:$0x1]
    %v57 = vld [vmem:[#allocation5 + $0x10] sm:$0x1]
    %v58 = vlaneseq
    %v59 = vshrl.u32 %v58, 7
    %v60 = vsub.s32 0, %v59
    %v61 = vrot.slane %v56, %v60
    %v62 = vmul.f32 %v55, %v61
    %v63 = vlaneseq
    %v64 = vshrl.u32 %v63, 7
    %v65 = vsub.s32 0, %v64
    %v66 = vrot.slane %v57, %v65
    %v67 = vadd.f32 %v62, %v66
    %v68 = vtanh.pop %v67
    %v69 = vld [vmem:[#allocation5 + $0x28] sm:$0xff]
    %v70 = vld [vmem:[#allocation5 + $0x30] sm:$0xff]
    %v71 = vld [vmem:[#allocation5 + $0x38] sm:$0xff]
    %v72 = vld [vmem:[#allocation5 + $0x40] sm:$0xff]
    %v73 = vld [vmem:[#allocation5 + $0x48] sm:$0xff]
    %v74 = vld [vmem:[#allocation5 + $0x50] sm:$0xff]
    %v75 = vld [vmem:[#allocation5 + $0x58] sm:$0xff]
    %v76 = vld [vmem:[#allocation5 + $0x60] sm:$0xff]
    %v77 = vld [vmem:[#allocation5 + $0x68] sm:$0xff]
    %v78 = vld [vmem:[#allocation5 + $0x70] sm:$0xff]
    %v79 = vld [vmem:[#allocation5 + $0x78] sm:$0xff]
    %v80 = vld [vmem:[#allocation5 + $0x80] sm:$0xff]
    %v81 = vld [vmem:[#allocation5 + $0x88] sm:$0xff]
    %v82 = vld [vmem:[#allocation5 + $0x90] sm:$0xff]
    %v83 = vld [vmem:[#allocation5 + $0x98] sm:$0xff]
    %v84 = vld [vmem:[#allocation5 + $0xa0] sm:$0xff]
    %v85 = vld [vmem:[#allocation5 + $0x18] sm:$0x1]
    %v86 = vlaneseq
    %v87 = vshrl.u32 %v86, 7
    %v88 = vsub.s32 0, %v87
    %v89 = vrot.slane %v85, %v88
    %90 = vmatprep.subr.mxu0 0.0
    %91 = vmatpush1.msra.mxu0 %v69
    %92 = vmatprep.subr.mxu0 0.0
    %93 = vmatpush1.msra.mxu0 %v70
    %94 = vmatprep.subr.mxu0 0.0
    %95 = vmatpush1.msra.mxu0 %v71
    %96 = vmatprep.subr.mxu0 0.0
    %97 = vmatpush1.msra.mxu0 %v72
    %98 = vmatprep.subr.mxu0 0.0
    %99 = vmatpush1.msra.mxu0 %v73
    %100 = vmatprep.subr.mxu0 0.0
    %101 = vmatpush1.msra.mxu0 %v74
    %102 = vmatprep.subr.mxu0 0.0
    %103 = vmatpush1.msra.mxu0 %v75
    %104 = vmatprep.subr.mxu0 0.0
    %105 = vmatpush1.msra.mxu0 %v76
    %106 = vmatprep.subr.mxu0 0.0
    %107 = vmatpush1.msra.mxu0 %v77
    %108 = vmatprep.subr.mxu0 0.0
    %109 = vmatpush1.msra.mxu0 %v78
    %110 = vmatprep.subr.mxu0 0.0
    %111 = vmatpush1.msra.mxu0 %v79
    %112 = vmatprep.subr.mxu0 0.0
    %113 = vmatpush1.msra.mxu0 %v80
    %114 = vmatprep.subr.mxu0 0.0
    %115 = vmatpush1.msra.mxu0 %v81
    %116 = vmatprep.subr.mxu0 0.0
    %117 = vmatpush1.msra.mxu0 %v82
    %118 = vmatprep.subr.mxu0 0.0
    %119 = vmatpush1.msra.mxu0 %v83
    %120 = vmatprep.subr.mxu0 0.0
    %121 = vmatpush1.msra.mxu0 %v84
    %122 = vmatprep.subr.mxu0 0.0
    %123 = vmatpush1.msra.mxu0 0.0
    %124 = vmatprep.subr.mxu0 0.0
    %125 = vmatpush1.msra.mxu0 0.0
    %126 = vmatprep.subr.mxu0 0.0
    %127 = vmatpush1.msra.mxu0 0.0
    %128 = vmatprep.subr.mxu0 0.0
    %129 = vmatpush1.msra.mxu0 0.0
    %130 = vmatprep.subr.mxu0 0.0
    %131 = vmatpush1.msra.mxu0 0.0
    %132 = vmatprep.subr.mxu0 0.0
    %133 = vmatpush1.msra.mxu0 0.0
    %134 = vmatprep.subr.mxu0 0.0
    %135 = vmatpush1.msra.mxu0 0.0
    %136 = vmatprep.subr.mxu0 0.0
    %137 = vmatpush1.msra.mxu0 0.0
    %138 = vmatprep.subr.mxu0 0.0
    %139 = vmatpush1.msra.mxu0 0.0
    %140 = vmatprep.subr.mxu0 0.0
    %141 = vmatpush1.msra.mxu0 0.0
    %142 = vmatprep.subr.mxu0 0.0
    %143 = vmatpush1.msra.mxu0 0.0
    %144 = vmatprep.subr.mxu0 0.0
    %145 = vmatpush1.msra.mxu0 0.0
    %146 = vmatprep.subr.mxu0 0.0
    %147 = vmatpush1.msra.mxu0 0.0
    %148 = vmatprep.subr.mxu0 0.0
    %149 = vmatpush1.msra.mxu0 0.0
    %150 = vmatprep.subr.mxu0 0.0
    %151 = vmatpush1.msra.mxu0 0.0
    %152 = vmatprep.subr.mxu0 0.0
    %153 = vmatpush1.msra.mxu0 0.0
    %154 = vmatprep.mubr.f32.mxu0 0.0
    %155 = vmatmul.mubr.f32.gmra.mrb[0].mxu0 %v68
    %v156 = vpop.f32.mrb[0].mxu0
    %v157 = vadd.f32 %v89, %v156
    %v158 = vpop.f32.mrb[0].mxu0
    %159 = vdwg.mxu0
    %v160 = vtanh.pop %v157
    %v161 = vld [vmem:[#allocation5 + $0xa8] sm:$0xff]
    %v162 = vld [vmem:[#allocation5 + $0xb0] sm:$0xff]
    %v163 = vld [vmem:[#allocation5 + $0xb8] sm:$0xff]
    %v164 = vld [vmem:[#allocation5 + $0xc0] sm:$0xff]
    %v165 = vld [vmem:[#allocation5 + $0xc8] sm:$0xff]
    %v166 = vld [vmem:[#allocation5 + $0xd0] sm:$0xff]
    %v167 = vld [vmem:[#allocation5 + $0xd8] sm:$0xff]
    %v168 = vld [vmem:[#allocation5 + $0xe0] sm:$0xff]
    %v169 = vld [vmem:[#allocation5 + $0xe8] sm:$0xff]
    %v170 = vld [vmem:[#allocation5 + $0xf0] sm:$0xff]
    %v171 = vld [vmem:[#allocation5 + $0xf8] sm:$0xff]
    %v172 = vld [vmem:[#allocation5 + $0x100] sm:$0xff]
    %v173 = vld [vmem:[#allocation5 + $0x108] sm:$0xff]
    %v174 = vld [vmem:[#allocation5 + $0x110] sm:$0xff]
    %v175 = vld [vmem:[#allocation5 + $0x118] sm:$0xff]
    %v176 = vld [vmem:[#allocation5 + $0x120] sm:$0xff]
    %v177 = vld [vmem:[#allocation5 + $0x20] sm:$0x1]
    %v178 = vlaneseq
    %v179 = vshrl.u32 %v178, 7
    %v180 = vsub.s32 0, %v179
    %v181 = vrot.slane %v177, %v180
    %182 = vmatprep.subr.mxu0 0.0
    %183 = vmatpush1.msra.mxu0 %v161
    %184 = vmatprep.subr.mxu0 0.0
    %185 = vmatpush1.msra.mxu0 %v162
    %186 = vmatprep.subr.mxu0 0.0
    %187 = vmatpush1.msra.mxu0 %v163
    %188 = vmatprep.subr.mxu0 0.0
    %189 = vmatpush1.msra.mxu0 %v164
    %190 = vmatprep.subr.mxu0 0.0
    %191 = vmatpush1.msra.mxu0 %v165
    %192 = vmatprep.subr.mxu0 0.0
    %193 = vmatpush1.msra.mxu0 %v166
    %194 = vmatprep.subr.mxu0 0.0
    %195 = vmatpush1.msra.mxu0 %v167
    %196 = vmatprep.subr.mxu0 0.0
    %197 = vmatpush1.msra.mxu0 %v168
    %198 = vmatprep.subr.mxu0 0.0
    %199 = vmatpush1.msra.mxu0 %v169
    %200 = vmatprep.subr.mxu0 0.0
    %201 = vmatpush1.msra.mxu0 %v170
    %202 = vmatprep.subr.mxu0 0.0
    %203 = vmatpush1.msra.mxu0 %v171
    %204 = vmatprep.subr.mxu0 0.0
    %205 = vmatpush1.msra.mxu0 %v172
    %206 = vmatprep.subr.mxu0 0.0
    %207 = vmatpush1.msra.mxu0 %v173
    %208 = vmatprep.subr.mxu0 0.0
    %209 = vmatpush1.msra.mxu0 %v174
    %210 = vmatprep.subr.mxu0 0.0
    %211 = vmatpush1.msra.mxu0 %v175
    %212 = vmatprep.subr.mxu0 0.0
    %213 = vmatpush1.msra.mxu0 %v176
    %214 = vmatprep.subr.mxu0 0.0
    %215 = vmatpush1.msra.mxu0 0.0
    %216 = vmatprep.subr.mxu0 0.0
    %217 = vmatpush1.msra.mxu0 0.0
    %218 = vmatprep.subr.mxu0 0.0
    %219 = vmatpush1.msra.mxu0 0.0
    %220 = vmatprep.subr.mxu0 0.0
    %221 = vmatpush1.msra.mxu0 0.0
    %222 = vmatprep.subr.mxu0 0.0
    %223 = vmatpush1.msra.mxu0 0.0
    %224 = vmatprep.subr.mxu0 0.0
    %225 = vmatpush1.msra.mxu0 0.0
    %226 = vmatprep.subr.mxu0 0.0
    %227 = vmatpush1.msra.mxu0 0.0
    %228 = vmatprep.subr.mxu0 0.0
    %229 = vmatpush1.msra.mxu0 0.0
    %230 = vmatprep.subr.mxu0 0.0
    %231 = vmatpush1.msra.mxu0 0.0
    %232 = vmatprep.subr.mxu0 0.0
    %233 = vmatpush1.msra.mxu0 0.0
    %234 = vmatprep.subr.mxu0 0.0
    %235 = vmatpush1.msra.mxu0 0.0
    %236 = vmatprep.subr.mxu0 0.0
    %237 = vmatpush1.msra.mxu0 0.0
    %238 = vmatprep.subr.mxu0 0.0
    %239 = vmatpush1.msra.mxu0 0.0
    %240 = vmatprep.subr.mxu0 0.0
    %241 = vmatpush1.msra.mxu0 0.0
    %242 = vmatprep.subr.mxu0 0.0
    %243 = vmatpush1.msra.mxu0 0.0
    %244 = vmatprep.subr.mxu0 0.0
    %245 = vmatpush1.msra.mxu0 0.0
    %246 = vmatprep.mubr.f32.mxu0 0.0
    %247 = vmatmul.mubr.f32.gmra.mrb[0].mxu0 %v160
    %v248 = vpop.f32.mrb[0].mxu0
    %v249 = vadd.f32 %v181, %v248
    %v250 = vpop.f32.mrb[0].mxu0
    %251 = vdwg.mxu0
    %v252 = vsel %vm40, %v249, -1e+30
    %253 = vmax.xlane.f32.xlu0 %v252
    %v254 = vpop.xlane.xlu0 %253
    %v255 = vsub.f32 %v252, %v254
    %v256 = vmul.f32 %v255, 1.442695
    %v257 = vpow.pop %v256
    %258 = vadd.xlane.f32.xlu0 %v257
    %v259 = vpop.xlane.xlu0 %258
    %v260 = vlog2.pop %v259
    %v261 = vmul.f32 %v260, 0.6931472
    %v262 = vsub.f32 %v255, %v261
    %v263 = vrcp.pop %v259
    %v264 = vmul.f32 %v257, %v263
    %v265 = vmul.f32 %v264, %v262
    %266 = vadd.xlane.f32.xlu0 %v265
    %v267 = vpop.xlane.xlu0 %266
    %v268 = vsub.f32 0.0, %v267
    %v269 = vadd.f32 %v252, %v41
    %v270 = vsel %vm40, %v269, -1e+30
    %271 = vmax.xlane.f32.xlu0 %v270
    %v272 = vpop.xlane.xlu0 %271
    %vm273 = vcmp.eq.f32.partialorder %v270, %v272
    %v274 = vsel %vm273, %v39, 128
    %v275 = vand.u32 %v274, 65535
    %v276 = vshra.s32 %v274, 16
    %v277 = vcvt.s32.f32 %v275
    %v278 = vcvt.s32.f32 %v276
    %279 = vmin.xlane.f32.xlu0 %v278
    %v280 = vpop.xlane.xlu0 %279
    %vm281 = vcmp.eq.f32.partialorder %v278, %v280
    %v282 = vsel %vm281, %v277, inf
    %283 = vmin.xlane.f32.xlu0 %v282
    %v284 = vpop.xlane.xlu0 %283
    %v285 = vcvt.f32.s32 %v284
    %v286 = vcvt.f32.s32 %v280
    %v287 = vshll.u32 %v286, 16
    %v288 = vadd.s32 %v287, %v285
    %vm289 = vcmp.eq.s32.totalorder %v39, %v288
    %v290 = vsel %vm289, %v262, 0.0
    %291 = vadd.xlane.f32.xlu0 %v290
    %v292 = vpop.xlane.xlu0 %291
    %vm293 = vcmp.eq.s32.totalorder %v39, 0
    %v294 = vcvt.s32.f32 %v288
    %vm295 = vcmp.eq.s32.totalorder %v39, 1
    %vm296 = vcmp.eq.s32.totalorder %v39, 2
    %v297 = vsel %vm296, %v268, 0.0
    %v298 = vsel %vm295, %v292, %v297
    %v299 = vsel %vm293, %v294, %v298
    %300 = vst [vmem:[#allocation7] sm:$0xff] %v299
    // Predicated region
    $region18: #{tpu_custom_call.1} parent=1 // pred_check
      _
    $region19: #{tpu_custom_call.1} parent=1 // pred_check_branch
      %302 = sbr.rel (0) target = $region21
    $region20: #{tpu_custom_call.1} parent=1 // pred_region
      %s304 = ssub.s32 128, 128
      %305 = vsyncadd [#allocation4], %s304
      %s307 = sshll.u32 [#allocation7], 4
      %s308 = int_to_ptr.vmem [resolvable:$true] %s307
      %310 = dma.vmem_to_hbm [thread:$0]  %s308, 128, %s2, [#allocation4]
    $region21: #{tpu_custom_call.1} parent=1 // pred_fallthru
      _
    // Predicated region
    $region22: #{tpu_custom_call.1} parent=1 // pred_check
      _
    $region23: #{tpu_custom_call.1} parent=1 // pred_check_branch
      %312 = sbr.rel (0) target = $region25
    $region24: #{tpu_custom_call.1} parent=1 // pred_region
      %313 = dma.done [#allocation4], 128
    $region25: #{tpu_custom_call.1} parent=1 // pred_fallthru
      _
    %314 = vsyncpa [#allocation3], 1
    %315 = vsyncpa [#allocation6], 1
    %316 = vsyncpa [#allocation4], 1

</llo_original>
